<compile_context>
chip_gen: v6e
topology: v6e:2x2x1
jax: 0.10.0
libtpu: 0.0.40
codegen_flags: <defaults>
</compile_context>

<pallas_src>
import functools

import jax
import jax.numpy as jnp
from jax.experimental import pallas as pl
from jax.experimental.pallas import tpu as pltpu


def _round_up(x, m):
    return (x + m - 1) // m * m


def _ds_conv_kernel(s_ref, w_ref, b_ref, o_ref):
    """One (row-block, C_out-block) tile of Conv2d(k=3, s=2, p=1).

    s_ref : (th*(W_out+1), 6C)  fused slab; each row is one (even, odd) padded
            column pair of one output row, lanes = [even kh0|kh1|kh2 | odd kh0|kh1|kh2].
    w_ref : (2, 6C, tco)  folded weights; w_ref[0] = taps kw=0 (even lanes) and
            kw=1 (odd lanes); w_ref[1] = kw=2 (even lanes, odd half zero).
    b_ref : (1, tco)  bias slice.
    o_ref : (th*(W_out+1), tco)  outputs per column pair; the pair w = W_out of
            each output row is spare and discarded by the wrapper.
    """
    a = s_ref[...]                                       # (m, 6C) straight from VMEM block
    # Two fused-K (K = 6C) MXU matmuls instead of six K = 2C dots + 5 acc adds.
    p1 = jnp.dot(a, w_ref[0], preferred_element_type=jnp.float32)
    p2 = jnp.dot(a, w_ref[1], preferred_element_type=jnp.float32)
    # kw=2 is produced at pair w but belongs to output column w-1: shift the
    # small product up one row (the last, spare row per block is discarded
    # downstream, so pad it with zeros).
    # TODO(synk): pltpu.roll(p2, m-1, axis=0) on the XLU would avoid this
    # sublane-shift relayout entirely if profiling shows it matters.
    p2 = jnp.concatenate([p2[1:], jnp.zeros((1, p2.shape[1]), p2.dtype)], axis=0)
    o_ref[...] = (p1 + p2 + b_ref[...]).astype(o_ref.dtype)


def _vmem_config():
    """Per-TPU-generation (budget, vmem_limit, target matmul rows per block)."""
    try:
        cap = int(pltpu.get_tpu_info().vmem_capacity_bytes)
    except Exception:                                     # query unavailable -> be conservative
        cap = 64 * 2 ** 20
    if cap >= 100 * 2 ** 20:                              # v5e / v6e: 128 MiB VMEM
        return 44 * 2 ** 20, 64 * 2 ** 20, 2048
    return 24 * 2 ** 20, 36 * 2 ** 20, 1024               # v7x: 64 MiB VMEM


def _pick_block_rows(rows_total, w_out, c_in, tco, in_bytes, budget, target_rows):
    """Output rows (of the N*H_out axis) per grid step, VMEM-budgeted."""
    pairs = w_out + 1

    def vmem_bytes(th):
        m = th * pairs
        slab = m * 6 * c_in * in_bytes                    # one slab block
        outb = m * tco * 4                                # one output block
        wts = 2 * 6 * c_in * tco * in_bytes + tco * 4     # folded weights + bias
        tmps = 3 * m * tco * 4                            # p1, p2, shifted p2 (f32)
        return 2 * slab + 2 * outb + 2 * wts + tmps       # x2: double buffering

    th = _round_up(max(1, target_rows // max(w_out, 1)), 8)
    th = min(th, _round_up(rows_total, 8))
    while th > 8 and vmem_bytes(th) > budget:
        th -= 8
    th = max(th, 8)
    return th, vmem_bytes(th)


def downsampling_forward(x_nchw, weight, bias, *, use_bf16=False):
    """Conv2d(kernel=3, stride=2, padding=1); NCHW in / NCHW out (PyTorch layout)."""
    N, C, H, W = x_nchw.shape
    C_out, C_in, KH, KW = weight.shape
    assert (C_in, KH, KW) == (C, 3, 3)
    H_out = (H + 2 - 3) // 2 + 1
    W_out = (W + 2 - 3) // 2 + 1
    pairs = W_out + 1

    C_out_p = _round_up(C_out, 128)                       # lane-dense output stores
    rows_total = N * H_out
    in_dtype = jnp.bfloat16 if use_bf16 else jnp.float32
    in_bytes = 2 if use_bf16 else 4

    budget, vmem_cap_limit, target_rows = _vmem_config()

    # C_out split: bound the (double-buffered) weight block, then revisit below
    # so the second TensorCore has work when there is only one row block.
    w_block_bytes = 2 * (2 * 6 * C * C_out_p * in_bytes)
    tco = 128 if (C_out_p > 128 and w_block_bytes > budget // 3) else C_out_p

    th, vmem_est = _pick_block_rows(rows_total, W_out, C, tco, in_bytes,
                                    budget, target_rows)
    n_blocks = pl.cdiv(rows_total, th)
    if n_blocks == 1 and C_out_p > 128:
        tco = 128
    n_co = C_out_p // tco
    rows_pad = n_blocks * th

    # ---- XLA glue: NCHW->NHWC, zero pad, single fused slab -------------------
    x = jnp.transpose(x_nchw, (0, 2, 3, 1))               # (N, H, W, C)
    Hp = 2 * H_out + 1                                    # padded rows used: 0..2*H_out
    Wp = 2 * pairs                                        # (even, odd) column pairs
    x_pad = jnp.pad(x, ((0, 0), (1, Hp - H - 1), (1, Wp - W - 1), (0, 0)))

    # For output row r = n*H_out + h and column pair w, lanes stack the three
    # vertical taps of the even column (2w) and of the odd column (2w+1):
    #   [ even kh0 | even kh1 | even kh2 | odd kh0 | odd kh1 | odd kh2 ]
    ev = x_pad[:, :, 0::2, :]                             # (N, Hp, pairs, C)
    od = x_pad[:, :, 1::2, :]
    parts = ([ev[:, kh:kh + 2 * H_out:2] for kh in range(3)]
             + [od[:, kh:kh + 2 * H_out:2] for kh in range(3)])
    slab = jnp.concatenate(parts, axis=-1)                # (N, H_out, pairs, 6C)
    slab = slab.reshape(rows_total * pairs, 6 * C).astype(in_dtype)
    if rows_pad != rows_total:
        slab = jnp.pad(slab, ((0, (rows_pad - rows_total) * pairs), (0, 0)))

    # ---- fold the 3x3 kernel into two (6C, C_out_p) matmul weights -----------
    w = jnp.transpose(weight, (2, 3, 1, 0))               # (3, 3, C, C_out)
    w = jnp.pad(w, ((0, 0), (0, 0), (0, 0), (0, C_out_p - C_out)))
    w1 = jnp.concatenate([w[0, 0], w[1, 0], w[2, 0],      # kw=0 on even lanes
                          w[0, 1], w[1, 1], w[2, 1]], axis=0)   # kw=1 on odd lanes
    w2 = jnp.concatenate([w[0, 2], w[1, 2], w[2, 2],      # kw=2 on even lanes
                          jnp.zeros((3 * C, C_out_p), w.dtype)], axis=0)
    # TODO(synk): the zero half of w2 is ~25% dead MXU work; switch to a K=3C
    # even-lane slice when C is a multiple of 128 / the layer is compute-bound.
    w_fold = jnp.stack([w1, w2], axis=0).astype(in_dtype)  # (2, 6C, C_out_p)
    b_mat = jnp.pad(bias, (0, C_out_p - C_out)).reshape(1, C_out_p)

    # ---- Pallas call ----------------------------------------------------------
    m_block = th * pairs
    cost = pl.CostEstimate(
        flops=2 * rows_pad * pairs * 12 * C * C_out_p,
        transcendentals=0,
        bytes_accessed=(rows_pad * pairs * 6 * C * in_bytes
                        + 2 * 6 * C * C_out_p * in_bytes + C_out_p * 4
                        + rows_pad * pairs * C_out_p * 4),
    )

    out_flat = pl.pallas_call(
        _ds_conv_kernel,
        out_shape=jax.ShapeDtypeStruct((rows_pad * pairs, C_out_p), jnp.float32),
        grid_spec=pltpu.PrefetchScalarGridSpec(
            num_scalar_prefetch=0,
            grid=(n_blocks, n_co),
            in_specs=[
                pl.BlockSpec((m_block, 6 * C), lambda i, j: (i, 0)),
                pl.BlockSpec((2, 6 * C, tco), lambda i, j: (0, 0, j)),
                pl.BlockSpec((1, tco), lambda i, j: (0, j)),
            ],
            out_specs=pl.BlockSpec((m_block, tco), lambda i, j: (i, j)),
        ),
        compiler_params=pltpu.CompilerParams(
            dimension_semantics=("parallel", "parallel"),
            vmem_limit_bytes=int(min(vmem_cap_limit,
                                     max(2 * vmem_est, 8 * 2 ** 20))),
        ),
        cost_estimate=cost,
    )(slab, w_fold, b_mat)

    # Drop the spare column pair per output row, the padded rows and the padded
    # output channels; fused by XLA into the final layout pass.
    out = out_flat.reshape(rows_pad, pairs, C_out_p)[:rows_total, :W_out, :C_out]
    out = out.reshape(N, H_out, W_out, C_out)              # NHWC
    return jnp.transpose(out, (0, 3, 1, 2))                # NCHW


if __name__ == "__main__":
    # Deterministic parameter + input construction (no checkpoint loading).
    channels = 64
    N, H, W = 2, 16, 16

    key = jax.random.PRNGKey(0)
    k_x, k_w, k_b = jax.random.split(key, 3)

    fan_in = channels * 3 * 3
    bound = 1.0 / (fan_in ** 0.5)
    weight = jax.random.uniform(k_w, (channels, channels, 3, 3),
                                jnp.float32, -bound, bound)   # (C_out, C_in, 3, 3)
    bias = jax.random.uniform(k_b, (channels,), jnp.float32, -bound, bound)
    x = jax.random.normal(k_x, (N, channels, H, W), jnp.float32)  # NCHW input

    fwd = jax.jit(downsampling_forward)
    y = jax.block_until_ready(fwd(x, weight, bias))

    # Reference: XLA conv (same semantics as torch Conv2d stride=2, pad=1).
    ref = jax.lax.conv_general_dilated(
        x, weight, window_strides=(2, 2), padding=((1, 1), (1, 1)),
        dimension_numbers=("NCHW", "OIHW", "NCHW"),
    ) + bias[None, :, None, None]
    ref = jax.block_until_ready(ref)

    assert y.shape == (N, channels, H // 2, W // 2), y.shape
    err = float(jnp.max(jnp.abs(y - ref)))
    assert jnp.allclose(y, ref, rtol=1e-4, atol=1e-4), err

    print("KERNEL_OK")
</pallas_src>

<mosaic_0001>
module attributes {stable_mosaic.version = 11 : i64} {
  func.func @_ds_conv_kernel(%arg0: i32, %arg1: i32, %arg2: memref<144x384xf32, #tpu.memory_space<vmem>>, %arg3: memref<2x384x128xf32, #tpu.memory_space<vmem>>, %arg4: memref<1x128xf32, #tpu.memory_space<vmem>>, %arg5: memref<144x128xf32, #tpu.memory_space<vmem>>) attributes {dimension_semantics = [#tpu.dimension_semantics<parallel>, #tpu.dimension_semantics<parallel>], iteration_bounds = array<i64: 1, 1>, scalar_prefetch = 0 : i64, scratch_operands = 0 : i64, tpu.core_type = #tpu.core_type<tc>, window_params = [{transform_indices = @transform_0, window_bounds = array<i64: 144, 384>}, {transform_indices = @transform_1, window_bounds = array<i64: 2, 384, 128>}, {transform_indices = @transform_2, window_bounds = array<i64: 1, 128>}, {transform_indices = @transform_3, window_bounds = array<i64: 144, 128>}]} {
    %c0 = arith.constant 0 : index
    %c0_0 = arith.constant 0 : index
    %0 = vector.load %arg2[%c0, %c0_0] : memref<144x384xf32, #tpu.memory_space<vmem>>, vector<144x384xf32>
    %c0_1 = arith.constant 0 : index
    %c0_2 = arith.constant 0 : index
    %c0_3 = arith.constant 0 : index
    %1 = vector.load %arg3[%c0_1, %c0_2, %c0_3] : memref<2x384x128xf32, #tpu.memory_space<vmem>>, vector<1x384x128xf32>
    %2 = vector.shape_cast %1 : vector<1x384x128xf32> to vector<384x128xf32>
    %cst = arith.constant dense<0.000000e+00> : vector<144x128xf32>
    %3 = tpu.matmul %0, %2, %cst {dimension_numbers = #tpu.dot_dimension_numbers<[1], [0], [0], [1], [0, 0, 1, 1], [], []>} : vector<144x384xf32>, vector<384x128xf32>, vector<144x128xf32> -> vector<144x128xf32>
    %c1 = arith.constant 1 : index
    %c0_4 = arith.constant 0 : index
    %c0_5 = arith.constant 0 : index
    %4 = vector.load %arg3[%c1, %c0_4, %c0_5] : memref<2x384x128xf32, #tpu.memory_space<vmem>>, vector<1x384x128xf32>
    %5 = vector.shape_cast %4 : vector<1x384x128xf32> to vector<384x128xf32>
    %cst_6 = arith.constant dense<0.000000e+00> : vector<144x128xf32>
    %6 = tpu.matmul %0, %5, %cst_6 {dimension_numbers = #tpu.dot_dimension_numbers<[1], [0], [0], [1], [0, 0, 1, 1], [], []>} : vector<144x384xf32>, vector<384x128xf32>, vector<144x128xf32> -> vector<144x128xf32>
    %7 = vector.extract_strided_slice %6 {offsets = [1, 0], sizes = [143, 128], strides = [1, 1]} : vector<144x128xf32> to vector<143x128xf32>
    %cst_7 = arith.constant 0.000000e+00 : f32
    %8 = vector.broadcast %cst_7 : f32 to vector<1x128xf32>
    %9 = tpu.concatenate %7, %8 in 0 : vector<143x128xf32>, vector<1x128xf32> -> vector<144x128xf32>
    %10 = arith.addf %3, %9 : vector<144x128xf32>
    %c0_8 = arith.constant 0 : index
    %c0_9 = arith.constant 0 : index
    %11 = vector.load %arg4[%c0_8, %c0_9] : memref<1x128xf32, #tpu.memory_space<vmem>>, vector<1x128xf32>
    %12 = vector.broadcast %11 : vector<1x128xf32> to vector<144x128xf32>
    %13 = arith.addf %10, %12 : vector<144x128xf32>
    %c0_10 = arith.constant 0 : index
    %c0_11 = arith.constant 0 : index
    %14 = vector.load %arg5[%c0_10, %c0_11] : memref<144x128xf32, #tpu.memory_space<vmem>>, vector<144x128xf32>
    tpu.vector_store %arg5[%c0_10, %c0_11], %13 {strides = array<i32>} : memref<144x128xf32, #tpu.memory_space<vmem>>, vector<144x128xf32>,
    return
  }
  func.func @transform_0(%arg0: i32, %arg1: i32) -> (i32, i32) {
    %c0_i32 = arith.constant 0 : i32
    %c0_i32_0 = arith.constant 0 : i32
    return %arg0, %c0_i32 : i32, i32
  }
  func.func @transform_1(%arg0: i32, %arg1: i32) -> (i32, i32, i32) {
    %c0_i32 = arith.constant 0 : i32
    %c0_i32_0 = arith.constant 0 : i32
    %c0_i32_1 = arith.constant 0 : i32
    return %c0_i32, %c0_i32_0, %arg1 : i32, i32, i32
  }
  func.func @transform_2(%arg0: i32, %arg1: i32) -> (i32, i32) {
    %c0_i32 = arith.constant 0 : i32
    %c0_i32_0 = arith.constant 0 : i32
    return %c0_i32, %arg1 : i32, i32
  }
  func.func @transform_3(%arg0: i32, %arg1: i32) -> (i32, i32) {
    %c0_i32 = arith.constant 0 : i32
    return %arg0, %arg1 : i32, i32
  }
}

</mosaic_0001>

<llo_original>
// kernel: downsampling_forward.1
$region0: #{downsampling_forward.1}
  #allocation0 [shape = 'u32[]', space=smem, size = 0x4, offset = 0x4, fixed_abs, tag = 'smem constant byte address 0x4 - core index']
  #allocation1 [shape = 'u32[144,128]{1,0:T(1,128)}', space=vmem, size = 0x12000, scoped, tag = 'internal scratch']
  %s0 = inlined_call_operand.vmem [shape: f32[144,384], index: 0, kind: input, shape index: {}]
  %s1 = inlined_call_operand.vmem [shape: f32[2,384,128], index: 1, kind: input, shape index: {}]
  %s2 = inlined_call_operand.vmem [shape: f32[1,128], index: 2, kind: input, shape index: {}]
  %s3 = inlined_call_operand.vmem [shape: f32[144,128], index: 3, kind: output, shape index: {}]
  %s4 = sld [smem:[#allocation0]]
  $region22: #{downsampling_forward.1} parent=0
    _
  %s6 = ssub.s32 1, %s4
  %s7 = scalar_select 0, %s6, %s4
  // Predicated region
  $region2: #{downsampling_forward.1} parent=0 // pred_check
    _
  $region3: #{downsampling_forward.1} parent=0 // pred_check_branch
    %9 = sbr.rel (0) target = $region5
  $region4: #{downsampling_forward.1} parent=0 // pred_region
    _
  $region5: #{downsampling_forward.1} parent=0 // pred_fallthru
    _
  // Predicated region
  $region6: #{downsampling_forward.1} parent=0 // pred_check
    _
  $region7: #{downsampling_forward.1} parent=0 // pred_check_branch
    %11 = sbr.rel (0) target = $region9
  $region8: #{downsampling_forward.1} parent=0 // pred_region
    _
  $region9: #{downsampling_forward.1} parent=0 // pred_fallthru
    _
  // Predicated region
  $region10: #{downsampling_forward.1} parent=0 // pred_check
    _
  $region11: #{downsampling_forward.1} parent=0 // pred_check_branch
    %13 = sbr.rel (0) target = $region13
  $region12: #{downsampling_forward.1} parent=0 // pred_region
    _
  $region13: #{downsampling_forward.1} parent=0 // pred_fallthru
    _
  %v14 = vld [vmem:[%s0] sm:$0xff]
  %v15 = vld [vmem:[%s0 + $0x8] sm:$0xff]
  %v16 = vld [vmem:[%s0 + $0x10] sm:$0xff]
  %v17 = vld [vmem:[%s0 + $0x18] sm:$0xff]
  %v18 = vld [vmem:[%s0 + $0x20] sm:$0xff]
  %v19 = vld [vmem:[%s0 + $0x28] sm:$0xff]
  %v20 = vld [vmem:[%s0 + $0x30] sm:$0xff]
  %v21 = vld [vmem:[%s0 + $0x38] sm:$0xff]
  %v22 = vld [vmem:[%s0 + $0x40] sm:$0xff]
  %v23 = vld [vmem:[%s0 + $0x48] sm:$0xff]
  %v24 = vld [vmem:[%s0 + $0x50] sm:$0xff]
  %v25 = vld [vmem:[%s0 + $0x58] sm:$0xff]
  %v26 = vld [vmem:[%s0 + $0x60] sm:$0xff]
  %v27 = vld [vmem:[%s0 + $0x68] sm:$0xff]
  %v28 = vld [vmem:[%s0 + $0x70] sm:$0xff]
  %v29 = vld [vmem:[%s0 + $0x78] sm:$0xff]
  %v30 = vld [vmem:[%s0 + $0x80] sm:$0xff]
  %v31 = vld [vmem:[%s0 + $0x88] sm:$0xff]
  %v32 = vld [vmem:[%s0 + $0x90] sm:$0xff]
  %v33 = vld [vmem:[%s0 + $0x98] sm:$0xff]
  %v34 = vld [vmem:[%s0 + $0xa0] sm:$0xff]
  %v35 = vld [vmem:[%s0 + $0xa8] sm:$0xff]
  %v36 = vld [vmem:[%s0 + $0xb0] sm:$0xff]
  %v37 = vld [vmem:[%s0 + $0xb8] sm:$0xff]
  %v38 = vld [vmem:[%s0 + $0xc0] sm:$0xff]
  %v39 = vld [vmem:[%s0 + $0xc8] sm:$0xff]
  %v40 = vld [vmem:[%s0 + $0xd0] sm:$0xff]
  %v41 = vld [vmem:[%s0 + $0xd8] sm:$0xff]
  %v42 = vld [vmem:[%s0 + $0xe0] sm:$0xff]
  %v43 = vld [vmem:[%s0 + $0xe8] sm:$0xff]
  %v44 = vld [vmem:[%s0 + $0xf0] sm:$0xff]
  %v45 = vld [vmem:[%s0 + $0xf8] sm:$0xff]
  %v46 = vld [vmem:[%s0 + $0x100] sm:$0xff]
  %v47 = vld [vmem:[%s0 + $0x108] sm:$0xff]
  %v48 = vld [vmem:[%s0 + $0x110] sm:$0xff]
  %v49 = vld [vmem:[%s0 + $0x118] sm:$0xff]
  %v50 = vld [vmem:[%s0 + $0x120] sm:$0xff]
  %v51 = vld [vmem:[%s0 + $0x128] sm:$0xff]
  %v52 = vld [vmem:[%s0 + $0x130] sm:$0xff]
  %v53 = vld [vmem:[%s0 + $0x138] sm:$0xff]
  %v54 = vld [vmem:[%s0 + $0x140] sm:$0xff]
  %v55 = vld [vmem:[%s0 + $0x148] sm:$0xff]
  %v56 = vld [vmem:[%s0 + $0x150] sm:$0xff]
  %v57 = vld [vmem:[%s0 + $0x158] sm:$0xff]
  %v58 = vld [vmem:[%s0 + $0x160] sm:$0xff]
  %v59 = vld [vmem:[%s0 + $0x168] sm:$0xff]
  %v60 = vld [vmem:[%s0 + $0x170] sm:$0xff]
  %v61 = vld [vmem:[%s0 + $0x178] sm:$0xff]
  %v62 = vld [vmem:[%s0 + $0x180] sm:$0xff]
  %v63 = vld [vmem:[%s0 + $0x188] sm:$0xff]
  %v64 = vld [vmem:[%s0 + $0x190] sm:$0xff]
  %v65 = vld [vmem:[%s0 + $0x198] sm:$0xff]
  %v66 = vld [vmem:[%s0 + $0x1a0] sm:$0xff]
  %v67 = vld [vmem:[%s0 + $0x1a8] sm:$0xff]
  %v68 = vld [vmem:[%s1] sm:$0xff]
  %v69 = vld [vmem:[%s1 + $0x8] sm:$0xff]
  %v70 = vld [vmem:[%s1 + $0x10] sm:$0xff]
  %v71 = vld [vmem:[%s1 + $0x18] sm:$0xff]
  %v72 = vld [vmem:[%s1 + $0x20] sm:$0xff]
  %v73 = vld [vmem:[%s1 + $0x28] sm:$0xff]
  %v74 = vld [vmem:[%s1 + $0x30] sm:$0xff]
  %v75 = vld [vmem:[%s1 + $0x38] sm:$0xff]
  %v76 = vld [vmem:[%s1 + $0x40] sm:$0xff]
  %v77 = vld [vmem:[%s1 + $0x48] sm:$0xff]
  %v78 = vld [vmem:[%s1 + $0x50] sm:$0xff]
  %v79 = vld [vmem:[%s1 + $0x58] sm:$0xff]
  %v80 = vld [vmem:[%s1 + $0x60] sm:$0xff]
  %v81 = vld [vmem:[%s1 + $0x68] sm:$0xff]
  %v82 = vld [vmem:[%s1 + $0x70] sm:$0xff]
  %v83 = vld [vmem:[%s1 + $0x78] sm:$0xff]
  %v84 = vld [vmem:[%s1 + $0x80] sm:$0xff]
  %v85 = vld [vmem:[%s1 + $0x88] sm:$0xff]
  %v86 = vld [vmem:[%s1 + $0x90] sm:$0xff]
  %v87 = vld [vmem:[%s1 + $0x98] sm:$0xff]
  %v88 = vld [vmem:[%s1 + $0xa0] sm:$0xff]
  %v89 = vld [vmem:[%s1 + $0xa8] sm:$0xff]
  %v90 = vld [vmem:[%s1 + $0xb0] sm:$0xff]
  %v91 = vld [vmem:[%s1 + $0xb8] sm:$0xff]
  %v92 = vld [vmem:[%s1 + $0xc0] sm:$0xff]
  %v93 = vld [vmem:[%s1 + $0xc8] sm:$0xff]
  %v94 = vld [vmem:[%s1 + $0xd0] sm:$0xff]
  %v95 = vld [vmem:[%s1 + $0xd8] sm:$0xff]
  %v96 = vld [vmem:[%s1 + $0xe0] sm:$0xff]
  %v97 = vld [vmem:[%s1 + $0xe8] sm:$0xff]
  %v98 = vld [vmem:[%s1 + $0xf0] sm:$0xff]
  %v99 = vld [vmem:[%s1 + $0xf8] sm:$0xff]
  %v100 = vld [vmem:[%s1 + $0x100] sm:$0xff]
  %v101 = vld [vmem:[%s1 + $0x108] sm:$0xff]
  %v102 = vld [vmem:[%s1 + $0x110] sm:$0xff]
  %v103 = vld [vmem:[%s1 + $0x118] sm:$0xff]
  %v104 = vld [vmem:[%s1 + $0x120] sm:$0xff]
  %v105 = vld [vmem:[%s1 + $0x128] sm:$0xff]
  %v106 = vld [vmem:[%s1 + $0x130] sm:$0xff]
  %v107 = vld [vmem:[%s1 + $0x138] sm:$0xff]
  %v108 = vld [vmem:[%s1 + $0x140] sm:$0xff]
  %v109 = vld [vmem:[%s1 + $0x148] sm:$0xff]
  %v110 = vld [vmem:[%s1 + $0x150] sm:$0xff]
  %v111 = vld [vmem:[%s1 + $0x158] sm:$0xff]
  %v112 = vld [vmem:[%s1 + $0x160] sm:$0xff]
  %v113 = vld [vmem:[%s1 + $0x168] sm:$0xff]
  %v114 = vld [vmem:[%s1 + $0x170] sm:$0xff]
  %v115 = vld [vmem:[%s1 + $0x178] sm:$0xff]
  %s116 = scalar_lea.vmem %s1, 384
  %v117 = vld [vmem:[%s116] sm:$0xff]
  %v118 = vld [vmem:[%s116 + $0x8] sm:$0xff]
  %v119 = vld [vmem:[%s116 + $0x10] sm:$0xff]
  %v120 = vld [vmem:[%s116 + $0x18] sm:$0xff]
  %v121 = vld [vmem:[%s116 + $0x20] sm:$0xff]
  %v122 = vld [vmem:[%s116 + $0x28] sm:$0xff]
  %v123 = vld [vmem:[%s116 + $0x30] sm:$0xff]
  %v124 = vld [vmem:[%s116 + $0x38] sm:$0xff]
  %v125 = vld [vmem:[%s116 + $0x40] sm:$0xff]
  %v126 = vld [vmem:[%s116 + $0x48] sm:$0xff]
  %v127 = vld [vmem:[%s116 + $0x50] sm:$0xff]
  %v128 = vld [vmem:[%s116 + $0x58] sm:$0xff]
  %v129 = vld [vmem:[%s116 + $0x60] sm:$0xff]
  %v130 = vld [vmem:[%s116 + $0x68] sm:$0xff]
  %v131 = vld [vmem:[%s116 + $0x70] sm:$0xff]
  %v132 = vld [vmem:[%s116 + $0x78] sm:$0xff]
  %v133 = vld [vmem:[%s116 + $0x80] sm:$0xff]
  %v134 = vld [vmem:[%s116 + $0x88] sm:$0xff]
  %v135 = vld [vmem:[%s116 + $0x90] sm:$0xff]
  %v136 = vld [vmem:[%s116 + $0x98] sm:$0xff]
  %v137 = vld [vmem:[%s116 + $0xa0] sm:$0xff]
  %v138 = vld [vmem:[%s116 + $0xa8] sm:$0xff]
  %v139 = vld [vmem:[%s116 + $0xb0] sm:$0xff]
  %v140 = vld [vmem:[%s116 + $0xb8] sm:$0xff]
  %v141 = vld [vmem:[%s116 + $0xc0] sm:$0xff]
  %v142 = vld [vmem:[%s116 + $0xc8] sm:$0xff]
  %v143 = vld [vmem:[%s116 + $0xd0] sm:$0xff]
  %v144 = vld [vmem:[%s116 + $0xd8] sm:$0xff]
  %v145 = vld [vmem:[%s116 + $0xe0] sm:$0xff]
  %v146 = vld [vmem:[%s116 + $0xe8] sm:$0xff]
  %v147 = vld [vmem:[%s116 + $0xf0] sm:$0xff]
  %v148 = vld [vmem:[%s116 + $0xf8] sm:$0xff]
  %v149 = vld [vmem:[%s116 + $0x100] sm:$0xff]
  %v150 = vld [vmem:[%s116 + $0x108] sm:$0xff]
  %v151 = vld [vmem:[%s116 + $0x110] sm:$0xff]
  %v152 = vld [vmem:[%s116 + $0x118] sm:$0xff]
  %v153 = vld [vmem:[%s116 + $0x120] sm:$0xff]
  %v154 = vld [vmem:[%s116 + $0x128] sm:$0xff]
  %v155 = vld [vmem:[%s116 + $0x130] sm:$0xff]
  %v156 = vld [vmem:[%s116 + $0x138] sm:$0xff]
  %v157 = vld [vmem:[%s116 + $0x140] sm:$0xff]
  %v158 = vld [vmem:[%s116 + $0x148] sm:$0xff]
  %v159 = vld [vmem:[%s116 + $0x150] sm:$0xff]
  %v160 = vld [vmem:[%s116 + $0x158] sm:$0xff]
  %v161 = vld [vmem:[%s116 + $0x160] sm:$0xff]
  %v162 = vld [vmem:[%s116 + $0x168] sm:$0xff]
  %v163 = vld [vmem:[%s116 + $0x170] sm:$0xff]
  %v164 = vld [vmem:[%s116 + $0x178] sm:$0xff]
  %165 = vmatprep.subr.mxu0 0.0
  %166 = vmatpush1.msra.mxu0 %v132
  %167 = vmatprep.subr.mxu0 0.0
  %168 = vmatpush1.msra.mxu0 %v131
  %169 = vmatprep.subr.mxu0 0.0
  %170 = vmatpush1.msra.mxu0 %v130
  %171 = vmatprep.subr.mxu0 0.0
  %172 = vmatpush1.msra.mxu0 %v129
  %173 = vmatprep.subr.mxu0 0.0
  %174 = vmatpush1.msra.mxu0 %v128
  %175 = vmatprep.subr.mxu0 0.0
  %176 = vmatpush1.msra.mxu0 %v127
  %177 = vmatprep.subr.mxu0 0.0
  %178 = vmatpush1.msra.mxu0 %v126
  %179 = vmatprep.subr.mxu0 0.0
  %180 = vmatpush1.msra.mxu0 %v125
  %181 = vmatprep.subr.mxu0 0.0
  %182 = vmatpush1.msra.mxu0 %v124
  %183 = vmatprep.subr.mxu0 0.0
  %184 = vmatpush1.msra.mxu0 %v123
  %185 = vmatprep.subr.mxu0 0.0
  %186 = vmatpush1.msra.mxu0 %v122
  %187 = vmatprep.subr.mxu0 0.0
  %188 = vmatpush1.msra.mxu0 %v121
  %189 = vmatprep.subr.mxu0 0.0
  %190 = vmatpush1.msra.mxu0 %v120
  %191 = vmatprep.subr.mxu0 0.0
  %192 = vmatpush1.msra.mxu0 %v119
  %193 = vmatprep.subr.mxu0 0.0
  %194 = vmatpush1.msra.mxu0 %v118
  %195 = vmatprep.subr.mxu0 0.0
  %196 = vmatpush1.msra.mxu0 %v117
  %197 = vmatprep.subr.mxu0 0.0
  %198 = vmatpush2.msra.mxu0 %v148
  %199 = vmatprep.subr.mxu0 0.0
  %200 = vmatpush2.msra.mxu0 %v147
  %201 = vmatprep.subr.mxu0 0.0
  %202 = vmatpush2.msra.mxu0 %v146
  %203 = vmatprep.subr.mxu0 0.0
  %204 = vmatpush2.msra.mxu0 %v145
  %205 = vmatprep.subr.mxu0 0.0
  %206 = vmatpush2.msra.mxu0 %v144
  %207 = vmatprep.subr.mxu0 0.0
  %208 = vmatpush2.msra.mxu0 %v143
  %209 = vmatprep.subr.mxu0 0.0
  %210 = vmatpush2.msra.mxu0 %v142
  %211 = vmatprep.subr.mxu0 0.0
  %212 = vmatpush2.msra.mxu0 %v141
  %213 = vmatprep.subr.mxu0 0.0
  %214 = vmatpush2.msra.mxu0 %v140
  %215 = vmatprep.subr.mxu0 0.0
  %216 = vmatpush2.msra.mxu0 %v139
  %217 = vmatprep.subr.mxu0 0.0
  %218 = vmatpush2.msra.mxu0 %v138
  %219 = vmatprep.subr.mxu0 0.0
  %220 = vmatpush2.msra.mxu0 %v137
  %221 = vmatprep.subr.mxu0 0.0
  %222 = vmatpush2.msra.mxu0 %v136
  %223 = vmatprep.subr.mxu0 0.0
  %224 = vmatpush2.msra.mxu0 %v135
  %225 = vmatprep.subr.mxu0 0.0
  %226 = vmatpush2.msra.mxu0 %v134
  %227 = vmatprep.subr.mxu0 0.0
  %228 = vmatpush2.msra.mxu0 %v133
  %229 = vmatprep.mubr.f32.mxu0 %v15
  %230 = vmatmul.mubr.f32.gmra.mxu0 %v14
  %v231 = vpop.f32.mrf.mxu0
  %v232 = vadd.f32 0.0, %v231
  %v233 = vpop.f32.mrf.mxu0
  %234 = vmatprep.mubr.f32.mxu0 %v18
  %235 = vmatmul.mubr.f32.gmra.mxu0 %v17
  %v236 = vpop.f32.mrf.mxu0
  %v237 = vadd.f32 0.0, %v236
  %v238 = vpop.f32.mrf.mxu0
  %239 = vmatprep.mubr.f32.mxu0 %v21
  %240 = vmatmul.mubr.f32.gmra.mxu0 %v20
  %v241 = vpop.f32.mrf.mxu0
  %v242 = vadd.f32 0.0, %v241
  %v243 = vpop.f32.mrf.mxu0
  %244 = vmatprep.mubr.f32.mxu0 %v24
  %245 = vmatmul.mubr.f32.gmra.mxu0 %v23
  %v246 = vpop.f32.mrf.mxu0
  %v247 = vadd.f32 0.0, %v246
  %v248 = vpop.f32.mrf.mxu0
  %249 = vmatprep.mubr.f32.mxu0 %v27
  %250 = vmatmul.mubr.f32.gmra.mxu0 %v26
  %v251 = vpop.f32.mrf.mxu0
  %v252 = vadd.f32 0.0, %v251
  %v253 = vpop.f32.mrf.mxu0
  %254 = vmatprep.mubr.f32.mxu0 %v30
  %255 = vmatmul.mubr.f32.gmra.mxu0 %v29
  %v256 = vpop.f32.mrf.mxu0
  %v257 = vadd.f32 0.0, %v256
  %v258 = vpop.f32.mrf.mxu0
  %259 = vmatprep.mubr.f32.mxu0 %v33
  %260 = vmatmul.mubr.f32.gmra.mxu0 %v32
  %v261 = vpop.f32.mrf.mxu0
  %v262 = vadd.f32 0.0, %v261
  %v263 = vpop.f32.mrf.mxu0
  %264 = vmatprep.mubr.f32.mxu0 %v36
  %265 = vmatmul.mubr.f32.gmra.mxu0 %v35
  %v266 = vpop.f32.mrf.mxu0
  %v267 = vadd.f32 0.0, %v266
  %v268 = vpop.f32.mrf.mxu0
  %269 = vmatprep.mubr.f32.mxu0 %v39
  %270 = vmatmul.mubr.f32.gmra.mxu0 %v38
  %v271 = vpop.f32.mrf.mxu0
  %v272 = vadd.f32 0.0, %v271
  %v273 = vpop.f32.mrf.mxu0
  %274 = vmatprep.mubr.f32.mxu0 %v42
  %275 = vmatmul.mubr.f32.gmra.mxu0 %v41
  %v276 = vpop.f32.mrf.mxu0
  %v277 = vadd.f32 0.0, %v276
  %v278 = vpop.f32.mrf.mxu0
  %279 = vmatprep.mubr.f32.mxu0 %v45
  %280 = vmatmul.mubr.f32.gmra.mxu0 %v44
  %v281 = vpop.f32.mrf.mxu0
  %v282 = vadd.f32 0.0, %v281
  %v283 = vpop.f32.mrf.mxu0
  %284 = vmatprep.mubr.f32.mxu0 %v48
  %285 = vmatmul.mubr.f32.gmra.mxu0 %v47
  %v286 = vpop.f32.mrf.mxu0
  %v287 = vadd.f32 0.0, %v286
  %v288 = vpop.f32.mrf.mxu0
  %289 = vmatprep.mubr.f32.mxu0 %v51
  %290 = vmatmul.mubr.f32.gmra.mxu0 %v50
  %v291 = vpop.f32.mrf.mxu0
  %v292 = vadd.f32 0.0, %v291
  %v293 = vpop.f32.mrf.mxu0
  %294 = vmatprep.mubr.f32.mxu0 %v54
  %295 = vmatmul.mubr.f32.gmra.mxu0 %v53
  %v296 = vpop.f32.mrf.mxu0
  %v297 = vadd.f32 0.0, %v296
  %v298 = vpop.f32.mrf.mxu0
  %299 = vmatprep.mubr.f32.mxu0 %v57
  %300 = vmatmul.mubr.f32.gmra.mxu0 %v56
  %v301 = vpop.f32.mrf.mxu0
  %v302 = vadd.f32 0.0, %v301
  %v303 = vpop.f32.mrf.mxu0
  %304 = vmatprep.mubr.f32.mxu0 %v60
  %305 = vmatmul.mubr.f32.gmra.mxu0 %v59
  %v306 = vpop.f32.mrf.mxu0
  %v307 = vadd.f32 0.0, %v306
  %v308 = vpop.f32.mrf.mxu0
  %309 = vmatprep.mubr.f32.mxu0 %v63
  %310 = vmatmul.mubr.f32.gmra.mxu0 %v62
  %v311 = vpop.f32.mrf.mxu0
  %v312 = vadd.f32 0.0, %v311
  %v313 = vpop.f32.mrf.mxu0
  %314 = vmatprep.mubr.f32.mxu0 %v66
  %315 = vmatmul.mubr.f32.gmra.mxu0 %v65
  %v316 = vpop.f32.mrf.mxu0
  %v317 = vadd.f32 0.0, %v316
  %v318 = vpop.f32.mrf.mxu0
  %319 = vdwg.mxu0
  %320 = vmatprep.subr.mxu0 0.0
  %321 = vmatpush1.msra.mxu0 %v164
  %322 = vmatprep.subr.mxu0 0.0
  %323 = vmatpush1.msra.mxu0 %v163
  %324 = vmatprep.subr.mxu0 0.0
  %325 = vmatpush1.msra.mxu0 %v162
  %326 = vmatprep.subr.mxu0 0.0
  %327 = vmatpush1.msra.mxu0 %v161
  %328 = vmatprep.subr.mxu0 0.0
  %329 = vmatpush1.msra.mxu0 %v160
  %330 = vmatprep.subr.mxu0 0.0
  %331 = vmatpush1.msra.mxu0 %v159
  %332 = vmatprep.subr.mxu0 0.0
  %333 = vmatpush1.msra.mxu0 %v158
  %334 = vmatprep.subr.mxu0 0.0
  %335 = vmatpush1.msra.mxu0 %v157
  %336 = vmatprep.subr.mxu0 0.0
  %337 = vmatpush1.msra.mxu0 %v156
  %338 = vmatprep.subr.mxu0 0.0
  %339 = vmatpush1.msra.mxu0 %v155
  %340 = vmatprep.subr.mxu0 0.0
  %341 = vmatpush1.msra.mxu0 %v154
  %342 = vmatprep.subr.mxu0 0.0
  %343 = vmatpush1.msra.mxu0 %v153
  %344 = vmatprep.subr.mxu0 0.0
  %345 = vmatpush1.msra.mxu0 %v152
  %346 = vmatprep.subr.mxu0 0.0
  %347 = vmatpush1.msra.mxu0 %v151
  %348 = vmatprep.subr.mxu0 0.0
  %349 = vmatpush1.msra.mxu0 %v150
  %350 = vmatprep.subr.mxu0 0.0
  %351 = vmatpush1.msra.mxu0 %v149
  %352 = vmatprep.subr.mxu0 0.0
  %353 = vmatpush2.msra.mxu0 0.0
  %354 = vmatprep.subr.mxu0 0.0
  %355 = vmatpush2.msra.mxu0 0.0
  %356 = vmatprep.subr.mxu0 0.0
  %357 = vmatpush2.msra.mxu0 0.0
  %358 = vmatprep.subr.mxu0 0.0
  %359 = vmatpush2.msra.mxu0 0.0
  %360 = vmatprep.subr.mxu0 0.0
  %361 = vmatpush2.msra.mxu0 0.0
  %362 = vmatprep.subr.mxu0 0.0
  %363 = vmatpush2.msra.mxu0 0.0
  %364 = vmatprep.subr.mxu0 0.0
  %365 = vmatpush2.msra.mxu0 0.0
  %366 = vmatprep.subr.mxu0 0.0
  %367 = vmatpush2.msra.mxu0 0.0
  %368 = vmatprep.subr.mxu0 0.0
  %369 = vmatpush2.msra.mxu0 0.0
  %370 = vmatprep.subr.mxu0 0.0
  %371 = vmatpush2.msra.mxu0 0.0
  %372 = vmatprep.subr.mxu0 0.0
  %373 = vmatpush2.msra.mxu0 0.0
  %374 = vmatprep.subr.mxu0 0.0
  %375 = vmatpush2.msra.mxu0 0.0
  %376 = vmatprep.subr.mxu0 0.0
  %377 = vmatpush2.msra.mxu0 0.0
  %378 = vmatprep.subr.mxu0 0.0
  %379 = vmatpush2.msra.mxu0 0.0
  %380 = vmatprep.subr.mxu0 0.0
  %381 = vmatpush2.msra.mxu0 0.0
  %382 = vmatprep.subr.mxu0 0.0
  %383 = vmatpush2.msra.mxu0 0.0
  %384 = vmatprep.mubr.f32.mxu0 0.0
  %385 = vmatmul.mubr.f32.gmra.mxu0 %v16
  %v386 = vpop.f32.mrf.mxu0
  %v387 = vadd.f32 %v232, %v386
  %v388 = vpop.f32.mrf.mxu0
  %389 = vmatprep.mubr.f32.mxu0 0.0
  %390 = vmatmul.mubr.f32.gmra.mxu0 %v19
  %v391 = vpop.f32.mrf.mxu0
  %v392 = vadd.f32 %v237, %v391
  %v393 = vpop.f32.mrf.mxu0
  %394 = vmatprep.mubr.f32.mxu0 0.0
  %395 = vmatmul.mubr.f32.gmra.mxu0 %v22
  %v396 = vpop.f32.mrf.mxu0
  %v397 = vadd.f32 %v242, %v396
  %v398 = vpop.f32.mrf.mxu0
  %399 = vmatprep.mubr.f32.mxu0 0.0
  %400 = vmatmul.mubr.f32.gmra.mxu0 %v25
  %v401 = vpop.f32.mrf.mxu0
  %v402 = vadd.f32 %v247, %v401
  %v403 = vpop.f32.mrf.mxu0
  %404 = vmatprep.mubr.f32.mxu0 0.0
  %405 = vmatmul.mubr.f32.gmra.mxu0 %v28
  %v406 = vpop.f32.mrf.mxu0
  %v407 = vadd.f32 %v252, %v406
  %v408 = vpop.f32.mrf.mxu0
  %409 = vmatprep.mubr.f32.mxu0 0.0
  %410 = vmatmul.mubr.f32.gmra.mxu0 %v31
  %v411 = vpop.f32.mrf.mxu0
  %v412 = vadd.f32 %v257, %v411
  %v413 = vpop.f32.mrf.mxu0
  %414 = vmatprep.mubr.f32.mxu0 0.0
  %415 = vmatmul.mubr.f32.gmra.mxu0 %v34
  %v416 = vpop.f32.mrf.mxu0
  %v417 = vadd.f32 %v262, %v416
  %v418 = vpop.f32.mrf.mxu0
  %419 = vmatprep.mubr.f32.mxu0 0.0
  %420 = vmatmul.mubr.f32.gmra.mxu0 %v37
  %v421 = vpop.f32.mrf.mxu0
  %v422 = vadd.f32 %v267, %v421
  %v423 = vpop.f32.mrf.mxu0
  %424 = vmatprep.mubr.f32.mxu0 0.0
  %425 = vmatmul.mubr.f32.gmra.mxu0 %v40
  %v426 = vpop.f32.mrf.mxu0
  %v427 = vadd.f32 %v272, %v426
  %v428 = vpop.f32.mrf.mxu0
  %429 = vmatprep.mubr.f32.mxu0 0.0
  %430 = vmatmul.mubr.f32.gmra.mxu0 %v43
  %v431 = vpop.f32.mrf.mxu0
  %v432 = vadd.f32 %v277, %v431
  %v433 = vpop.f32.mrf.mxu0
  %434 = vmatprep.mubr.f32.mxu0 0.0
  %435 = vmatmul.mubr.f32.gmra.mxu0 %v46
  %v436 = vpop.f32.mrf.mxu0
  %v437 = vadd.f32 %v282, %v436
  %v438 = vpop.f32.mrf.mxu0
  %439 = vmatprep.mubr.f32.mxu0 0.0
  %440 = vmatmul.mubr.f32.gmra.mxu0 %v49
  %v441 = vpop.f32.mrf.mxu0
  %v442 = vadd.f32 %v287, %v441
  %v443 = vpop.f32.mrf.mxu0
  %444 = vmatprep.mubr.f32.mxu0 0.0
  %445 = vmatmul.mubr.f32.gmra.mxu0 %v52
  %v446 = vpop.f32.mrf.mxu0
  %v447 = vadd.f32 %v292, %v446
  %v448 = vpop.f32.mrf.mxu0
  %449 = vmatprep.mubr.f32.mxu0 0.0
  %450 = vmatmul.mubr.f32.gmra.mxu0 %v55
  %v451 = vpop.f32.mrf.mxu0
  %v452 = vadd.f32 %v297, %v451
  %v453 = vpop.f32.mrf.mxu0
  %454 = vmatprep.mubr.f32.mxu0 0.0
  %455 = vmatmul.mubr.f32.gmra.mxu0 %v58
  %v456 = vpop.f32.mrf.mxu0
  %v457 = vadd.f32 %v302, %v456
  %v458 = vpop.f32.mrf.mxu0
  %459 = vmatprep.mubr.f32.mxu0 0.0
  %460 = vmatmul.mubr.f32.gmra.mxu0 %v61
  %v461 = vpop.f32.mrf.mxu0
  %v462 = vadd.f32 %v307, %v461
  %v463 = vpop.f32.mrf.mxu0
  %464 = vmatprep.mubr.f32.mxu0 0.0
  %465 = vmatmul.mubr.f32.gmra.mxu0 %v64
  %v466 = vpop.f32.mrf.mxu0
  %v467 = vadd.f32 %v312, %v466
  %v468 = vpop.f32.mrf.mxu0
  %469 = vmatprep.mubr.f32.mxu0 0.0
  %470 = vmatmul.mubr.f32.gmra.mxu0 %v67
  %v471 = vpop.f32.mrf.mxu0
  %v472 = vadd.f32 %v317, %v471
  %v473 = vpop.f32.mrf.mxu0
  %474 = vdwg.mxu0
  %vm493 = vcmask 1046528
  %v494 = vrot.slane %v387, 1
  %v495 = vrot.slane %v392, 1
  %v496 = vsel %vm493, %v494, %v495
  %v497 = vrot.slane %v397, 1
  %v498 = vsel %vm493, %v495, %v497
  %v499 = vrot.slane %v402, 1
  %v500 = vsel %vm493, %v497, %v499
  %v501 = vrot.slane %v407, 1
  %v502 = vsel %vm493, %v499, %v501
  %v503 = vrot.slane %v412, 1
  %v504 = vsel %vm493, %v501, %v503
  %v505 = vrot.slane %v417, 1
  %v506 = vsel %vm493, %v503, %v505
  %v507 = vrot.slane %v422, 1
  %v508 = vsel %vm493, %v505, %v507
  %v509 = vrot.slane %v427, 1
  %v510 = vsel %vm493, %v507, %v509
  %v511 = vrot.slane %v432, 1
  %v512 = vsel %vm493, %v509, %v511
  %v513 = vrot.slane %v437, 1
  %v514 = vsel %vm493, %v511, %v513
  %v515 = vrot.slane %v442, 1
  %v516 = vsel %vm493, %v513, %v515
  %v517 = vrot.slane %v447, 1
  %v518 = vsel %vm493, %v515, %v517
  %v519 = vrot.slane %v452, 1
  %v520 = vsel %vm493, %v517, %v519
  %v521 = vrot.slane %v457, 1
  %v522 = vsel %vm493, %v519, %v521
  %v523 = vrot.slane %v462, 1
  %v524 = vsel %vm493, %v521, %v523
  %v525 = vrot.slane %v467, 1
  %v526 = vsel %vm493, %v523, %v525
  %v527 = vrot.slane %v472, 1
  %v528 = vsel %vm493, %v525, %v527
  %v547 = vsel %vm493, %v527, 0.0
  %548 = vmatprep.subr.mxu0 0.0
  %549 = vmatpush1.msra.mxu0 %v83
  %550 = vmatprep.subr.mxu0 0.0
  %551 = vmatpush1.msra.mxu0 %v82
  %552 = vmatprep.subr.mxu0 0.0
  %553 = vmatpush1.msra.mxu0 %v81
  %554 = vmatprep.subr.mxu0 0.0
  %555 = vmatpush1.msra.mxu0 %v80
  %556 = vmatprep.subr.mxu0 0.0
  %557 = vmatpush1.msra.mxu0 %v79
  %558 = vmatprep.subr.mxu0 0.0
  %559 = vmatpush1.msra.mxu0 %v78
  %560 = vmatprep.subr.mxu0 0.0
  %561 = vmatpush1.msra.mxu0 %v77
  %562 = vmatprep.subr.mxu0 0.0
  %563 = vmatpush1.msra.mxu0 %v76
  %564 = vmatprep.subr.mxu0 0.0
  %565 = vmatpush1.msra.mxu0 %v75
  %566 = vmatprep.subr.mxu0 0.0
  %567 = vmatpush1.msra.mxu0 %v74
  %568 = vmatprep.subr.mxu0 0.0
  %569 = vmatpush1.msra.mxu0 %v73
  %570 = vmatprep.subr.mxu0 0.0
  %571 = vmatpush1.msra.mxu0 %v72
  %572 = vmatprep.subr.mxu0 0.0
  %573 = vmatpush1.msra.mxu0 %v71
  %574 = vmatprep.subr.mxu0 0.0
  %575 = vmatpush1.msra.mxu0 %v70
  %576 = vmatprep.subr.mxu0 0.0
  %577 = vmatpush1.msra.mxu0 %v69
  %578 = vmatprep.subr.mxu0 0.0
  %579 = vmatpush1.msra.mxu0 %v68
  %580 = vmatprep.subr.mxu0 0.0
  %581 = vmatpush2.msra.mxu0 %v99
  %582 = vmatprep.subr.mxu0 0.0
  %583 = vmatpush2.msra.mxu0 %v98
  %584 = vmatprep.subr.mxu0 0.0
  %585 = vmatpush2.msra.mxu0 %v97
  %586 = vmatprep.subr.mxu0 0.0
  %587 = vmatpush2.msra.mxu0 %v96
  %588 = vmatprep.subr.mxu0 0.0
  %589 = vmatpush2.msra.mxu0 %v95
  %590 = vmatprep.subr.mxu0 0.0
  %591 = vmatpush2.msra.mxu0 %v94
  %592 = vmatprep.subr.mxu0 0.0
  %593 = vmatpush2.msra.mxu0 %v93
  %594 = vmatprep.subr.mxu0 0.0
  %595 = vmatpush2.msra.mxu0 %v92
  %596 = vmatprep.subr.mxu0 0.0
  %597 = vmatpush2.msra.mxu0 %v91
  %598 = vmatprep.subr.mxu0 0.0
  %599 = vmatpush2.msra.mxu0 %v90
  %600 = vmatprep.subr.mxu0 0.0
  %601 = vmatpush2.msra.mxu0 %v89
  %602 = vmatprep.subr.mxu0 0.0
  %603 = vmatpush2.msra.mxu0 %v88
  %604 = vmatprep.subr.mxu0 0.0
  %605 = vmatpush2.msra.mxu0 %v87
  %606 = vmatprep.subr.mxu0 0.0
  %607 = vmatpush2.msra.mxu0 %v86
  %608 = vmatprep.subr.mxu0 0.0
  %609 = vmatpush2.msra.mxu0 %v85
  %610 = vmatprep.subr.mxu0 0.0
  %611 = vmatpush2.msra.mxu0 %v84
  %612 = vmatprep.mubr.f32.mxu0 %v15
  %613 = vmatmul.mubr.f32.gmra.mxu0 %v14
  %v614 = vpop.f32.mrf.mxu0
  %v615 = vadd.f32 %v496, %v614
  %v616 = vpop.f32.mrf.mxu0
  %617 = vmatprep.mubr.f32.mxu0 %v18
  %618 = vmatmul.mubr.f32.gmra.mxu0 %v17
  %v619 = vpop.f32.mrf.mxu0
  %v620 = vadd.f32 %v498, %v619
  %v621 = vpop.f32.mrf.mxu0
  %622 = vmatprep.mubr.f32.mxu0 %v21
  %623 = vmatmul.mubr.f32.gmra.mxu0 %v20
  %v624 = vpop.f32.mrf.mxu0
  %v625 = vadd.f32 %v500, %v624
  %v626 = vpop.f32.mrf.mxu0
  %627 = vmatprep.mubr.f32.mxu0 %v24
  %628 = vmatmul.mubr.f32.gmra.mxu0 %v23
  %v629 = vpop.f32.mrf.mxu0
  %v630 = vadd.f32 %v502, %v629
  %v631 = vpop.f32.mrf.mxu0
  %632 = vmatprep.mubr.f32.mxu0 %v27
  %633 = vmatmul.mubr.f32.gmra.mxu0 %v26
  %v634 = vpop.f32.mrf.mxu0
  %v635 = vadd.f32 %v504, %v634
  %v636 = vpop.f32.mrf.mxu0
  %637 = vmatprep.mubr.f32.mxu0 %v30
  %638 = vmatmul.mubr.f32.gmra.mxu0 %v29
  %v639 = vpop.f32.mrf.mxu0
  %v640 = vadd.f32 %v506, %v639
  %v641 = vpop.f32.mrf.mxu0
  %642 = vmatprep.mubr.f32.mxu0 %v33
  %643 = vmatmul.mubr.f32.gmra.mxu0 %v32
  %v644 = vpop.f32.mrf.mxu0
  %v645 = vadd.f32 %v508, %v644
  %v646 = vpop.f32.mrf.mxu0
  %647 = vmatprep.mubr.f32.mxu0 %v36
  %648 = vmatmul.mubr.f32.gmra.mxu0 %v35
  %v649 = vpop.f32.mrf.mxu0
  %v650 = vadd.f32 %v510, %v649
  %v651 = vpop.f32.mrf.mxu0
  %652 = vmatprep.mubr.f32.mxu0 %v39
  %653 = vmatmul.mubr.f32.gmra.mxu0 %v38
  %v654 = vpop.f32.mrf.mxu0
  %v655 = vadd.f32 %v512, %v654
  %v656 = vpop.f32.mrf.mxu0
  %657 = vmatprep.mubr.f32.mxu0 %v42
  %658 = vmatmul.mubr.f32.gmra.mxu0 %v41
  %v659 = vpop.f32.mrf.mxu0
  %v660 = vadd.f32 %v514, %v659
  %v661 = vpop.f32.mrf.mxu0
  %662 = vmatprep.mubr.f32.mxu0 %v45
  %663 = vmatmul.mubr.f32.gmra.mxu0 %v44
  %v664 = vpop.f32.mrf.mxu0
  %v665 = vadd.f32 %v516, %v664
  %v666 = vpop.f32.mrf.mxu0
  %667 = vmatprep.mubr.f32.mxu0 %v48
  %668 = vmatmul.mubr.f32.gmra.mxu0 %v47
  %v669 = vpop.f32.mrf.mxu0
  %v670 = vadd.f32 %v518, %v669
  %v671 = vpop.f32.mrf.mxu0
  %672 = vmatprep.mubr.f32.mxu0 %v51
  %673 = vmatmul.mubr.f32.gmra.mxu0 %v50
  %v674 = vpop.f32.mrf.mxu0
  %v675 = vadd.f32 %v520, %v674
  %v676 = vpop.f32.mrf.mxu0
  %677 = vmatprep.mubr.f32.mxu0 %v54
  %678 = vmatmul.mubr.f32.gmra.mxu0 %v53
  %v679 = vpop.f32.mrf.mxu0
  %v680 = vadd.f32 %v522, %v679
  %v681 = vpop.f32.mrf.mxu0
  %682 = vmatprep.mubr.f32.mxu0 %v57
  %683 = vmatmul.mubr.f32.gmra.mxu0 %v56
  %v684 = vpop.f32.mrf.mxu0
  %v685 = vadd.f32 %v524, %v684
  %v686 = vpop.f32.mrf.mxu0
  %687 = vmatprep.mubr.f32.mxu0 %v60
  %688 = vmatmul.mubr.f32.gmra.mxu0 %v59
  %v689 = vpop.f32.mrf.mxu0
  %v690 = vadd.f32 %v526, %v689
  %v691 = vpop.f32.mrf.mxu0
  %692 = vmatprep.mubr.f32.mxu0 %v63
  %693 = vmatmul.mubr.f32.gmra.mxu0 %v62
  %v694 = vpop.f32.mrf.mxu0
  %v695 = vadd.f32 %v528, %v694
  %v696 = vpop.f32.mrf.mxu0
  %697 = vmatprep.mubr.f32.mxu0 %v66
  %698 = vmatmul.mubr.f32.gmra.mxu0 %v65
  %v699 = vpop.f32.mrf.mxu0
  %v700 = vadd.f32 %v547, %v699
  %v701 = vpop.f32.mrf.mxu0
  %702 = vdwg.mxu0
  %703 = vmatprep.subr.mxu0 0.0
  %704 = vmatpush1.msra.mxu0 %v115
  %705 = vmatprep.subr.mxu0 0.0
  %706 = vmatpush1.msra.mxu0 %v114
  %707 = vmatprep.subr.mxu0 0.0
  %708 = vmatpush1.msra.mxu0 %v113
  %709 = vmatprep.subr.mxu0 0.0
  %710 = vmatpush1.msra.mxu0 %v112
  %711 = vmatprep.subr.mxu0 0.0
  %712 = vmatpush1.msra.mxu0 %v111
  %713 = vmatprep.subr.mxu0 0.0
  %714 = vmatpush1.msra.mxu0 %v110
  %715 = vmatprep.subr.mxu0 0.0
  %716 = vmatpush1.msra.mxu0 %v109
  %717 = vmatprep.subr.mxu0 0.0
  %718 = vmatpush1.msra.mxu0 %v108
  %719 = vmatprep.subr.mxu0 0.0
  %720 = vmatpush1.msra.mxu0 %v107
  %721 = vmatprep.subr.mxu0 0.0
  %722 = vmatpush1.msra.mxu0 %v106
  %723 = vmatprep.subr.mxu0 0.0
  %724 = vmatpush1.msra.mxu0 %v105
  %725 = vmatprep.subr.mxu0 0.0
  %726 = vmatpush1.msra.mxu0 %v104
  %727 = vmatprep.subr.mxu0 0.0
  %728 = vmatpush1.msra.mxu0 %v103
  %729 = vmatprep.subr.mxu0 0.0
  %730 = vmatpush1.msra.mxu0 %v102
  %731 = vmatprep.subr.mxu0 0.0
  %732 = vmatpush1.msra.mxu0 %v101
  %733 = vmatprep.subr.mxu0 0.0
  %734 = vmatpush1.msra.mxu0 %v100
  %735 = vmatprep.subr.mxu0 0.0
  %736 = vmatpush2.msra.mxu0 0.0
  %737 = vmatprep.subr.mxu0 0.0
  %738 = vmatpush2.msra.mxu0 0.0
  %739 = vmatprep.subr.mxu0 0.0
  %740 = vmatpush2.msra.mxu0 0.0
  %741 = vmatprep.subr.mxu0 0.0
  %742 = vmatpush2.msra.mxu0 0.0
  %743 = vmatprep.subr.mxu0 0.0
  %744 = vmatpush2.msra.mxu0 0.0
  %745 = vmatprep.subr.mxu0 0.0
  %746 = vmatpush2.msra.mxu0 0.0
  %747 = vmatprep.subr.mxu0 0.0
  %748 = vmatpush2.msra.mxu0 0.0
  %749 = vmatprep.subr.mxu0 0.0
  %750 = vmatpush2.msra.mxu0 0.0
  %751 = vmatprep.subr.mxu0 0.0
  %752 = vmatpush2.msra.mxu0 0.0
  %753 = vmatprep.subr.mxu0 0.0
  %754 = vmatpush2.msra.mxu0 0.0
  %755 = vmatprep.subr.mxu0 0.0
  %756 = vmatpush2.msra.mxu0 0.0
  %757 = vmatprep.subr.mxu0 0.0
  %758 = vmatpush2.msra.mxu0 0.0
  %759 = vmatprep.subr.mxu0 0.0
  %760 = vmatpush2.msra.mxu0 0.0
  %761 = vmatprep.subr.mxu0 0.0
  %762 = vmatpush2.msra.mxu0 0.0
  %763 = vmatprep.subr.mxu0 0.0
  %764 = vmatpush2.msra.mxu0 0.0
  %765 = vmatprep.subr.mxu0 0.0
  %766 = vmatpush2.msra.mxu0 0.0
  %767 = vmatprep.mubr.f32.mxu0 0.0
  %768 = vmatmul.mubr.f32.gmra.mxu0 %v16
  %v769 = vpop.f32.mrf.mxu0
  %v770 = vadd.f32 %v615, %v769
  %v771 = vpop.f32.mrf.mxu0
  %772 = vmatprep.mubr.f32.mxu0 0.0
  %773 = vmatmul.mubr.f32.gmra.mxu0 %v19
  %v774 = vpop.f32.mrf.mxu0
  %v775 = vadd.f32 %v620, %v774
  %v776 = vpop.f32.mrf.mxu0
  %777 = vmatprep.mubr.f32.mxu0 0.0
  %778 = vmatmul.mubr.f32.gmra.mxu0 %v22
  %v779 = vpop.f32.mrf.mxu0
  %v780 = vadd.f32 %v625, %v779
  %v781 = vpop.f32.mrf.mxu0
  %782 = vmatprep.mubr.f32.mxu0 0.0
  %783 = vmatmul.mubr.f32.gmra.mxu0 %v25
  %v784 = vpop.f32.mrf.mxu0
  %v785 = vadd.f32 %v630, %v784
  %v786 = vpop.f32.mrf.mxu0
  %787 = vmatprep.mubr.f32.mxu0 0.0
  %788 = vmatmul.mubr.f32.gmra.mxu0 %v28
  %v789 = vpop.f32.mrf.mxu0
  %v790 = vadd.f32 %v635, %v789
  %v791 = vpop.f32.mrf.mxu0
  %792 = vmatprep.mubr.f32.mxu0 0.0
  %793 = vmatmul.mubr.f32.gmra.mxu0 %v31
  %v794 = vpop.f32.mrf.mxu0
  %v795 = vadd.f32 %v640, %v794
  %v796 = vpop.f32.mrf.mxu0
  %797 = vmatprep.mubr.f32.mxu0 0.0
  %798 = vmatmul.mubr.f32.gmra.mxu0 %v34
  %v799 = vpop.f32.mrf.mxu0
  %v800 = vadd.f32 %v645, %v799
  %v801 = vpop.f32.mrf.mxu0
  %802 = vmatprep.mubr.f32.mxu0 0.0
  %803 = vmatmul.mubr.f32.gmra.mxu0 %v37
  %v804 = vpop.f32.mrf.mxu0
  %v805 = vadd.f32 %v650, %v804
  %v806 = vpop.f32.mrf.mxu0
  %807 = vmatprep.mubr.f32.mxu0 0.0
  %808 = vmatmul.mubr.f32.gmra.mxu0 %v40
  %v809 = vpop.f32.mrf.mxu0
  %v810 = vadd.f32 %v655, %v809
  %v811 = vpop.f32.mrf.mxu0
  %812 = vmatprep.mubr.f32.mxu0 0.0
  %813 = vmatmul.mubr.f32.gmra.mxu0 %v43
  %v814 = vpop.f32.mrf.mxu0
  %v815 = vadd.f32 %v660, %v814
  %v816 = vpop.f32.mrf.mxu0
  %817 = vmatprep.mubr.f32.mxu0 0.0
  %818 = vmatmul.mubr.f32.gmra.mxu0 %v46
  %v819 = vpop.f32.mrf.mxu0
  %v820 = vadd.f32 %v665, %v819
  %v821 = vpop.f32.mrf.mxu0
  %822 = vmatprep.mubr.f32.mxu0 0.0
  %823 = vmatmul.mubr.f32.gmra.mxu0 %v49
  %v824 = vpop.f32.mrf.mxu0
  %v825 = vadd.f32 %v670, %v824
  %v826 = vpop.f32.mrf.mxu0
  %827 = vmatprep.mubr.f32.mxu0 0.0
  %828 = vmatmul.mubr.f32.gmra.mxu0 %v52
  %v829 = vpop.f32.mrf.mxu0
  %v830 = vadd.f32 %v675, %v829
  %v831 = vpop.f32.mrf.mxu0
  %832 = vmatprep.mubr.f32.mxu0 0.0
  %833 = vmatmul.mubr.f32.gmra.mxu0 %v55
  %v834 = vpop.f32.mrf.mxu0
  %v835 = vadd.f32 %v680, %v834
  %v836 = vpop.f32.mrf.mxu0
  %837 = vmatprep.mubr.f32.mxu0 0.0
  %838 = vmatmul.mubr.f32.gmra.mxu0 %v58
  %v839 = vpop.f32.mrf.mxu0
  %v840 = vadd.f32 %v685, %v839
  %v841 = vpop.f32.mrf.mxu0
  %842 = vmatprep.mubr.f32.mxu0 0.0
  %843 = vmatmul.mubr.f32.gmra.mxu0 %v61
  %v844 = vpop.f32.mrf.mxu0
  %v845 = vadd.f32 %v690, %v844
  %v846 = vpop.f32.mrf.mxu0
  %847 = vmatprep.mubr.f32.mxu0 0.0
  %848 = vmatmul.mubr.f32.gmra.mxu0 %v64
  %v849 = vpop.f32.mrf.mxu0
  %v850 = vadd.f32 %v695, %v849
  %v851 = vpop.f32.mrf.mxu0
  %852 = vmatprep.mubr.f32.mxu0 0.0
  %853 = vmatmul.mubr.f32.gmra.mxu0 %v67
  %v854 = vpop.f32.mrf.mxu0
  %v855 = vadd.f32 %v700, %v854
  %v856 = vpop.f32.mrf.mxu0
  %857 = vdwg.mxu0
  %v858 = vld [vmem:[%s2] sm:$0x1]
  %v860 = vlaneseq
  %v861 = vshrl.u32 %v860, 7
  %v862 = vsub.s32 0, %v861
  %v863 = vrot.slane %v858, %v862
  %v865 = vadd.f32 %v770, %v863
  %v866 = vadd.f32 %v775, %v863
  %v867 = vadd.f32 %v780, %v863
  %v868 = vadd.f32 %v785, %v863
  %v869 = vadd.f32 %v790, %v863
  %v870 = vadd.f32 %v795, %v863
  %v871 = vadd.f32 %v800, %v863
  %v872 = vadd.f32 %v805, %v863
  %v873 = vadd.f32 %v810, %v863
  %v874 = vadd.f32 %v815, %v863
  %v875 = vadd.f32 %v820, %v863
  %v876 = vadd.f32 %v825, %v863
  %v877 = vadd.f32 %v830, %v863
  %v878 = vadd.f32 %v835, %v863
  %v879 = vadd.f32 %v840, %v863
  %v880 = vadd.f32 %v845, %v863
  %v881 = vadd.f32 %v850, %v863
  %v882 = vadd.f32 %v855, %v863
  %883 = vst [vmem:[%s3] sm:$0xff] %v865
  %884 = vst [vmem:[%s3 + $0x8] sm:$0xff] %v866
  %885 = vst [vmem:[%s3 + $0x10] sm:$0xff] %v867
  %886 = vst [vmem:[%s3 + $0x18] sm:$0xff] %v868
  %887 = vst [vmem:[%s3 + $0x20] sm:$0xff] %v869
  %888 = vst [vmem:[%s3 + $0x28] sm:$0xff] %v870
  %889 = vst [vmem:[%s3 + $0x30] sm:$0xff] %v871
  %890 = vst [vmem:[%s3 + $0x38] sm:$0xff] %v872
  %891 = vst [vmem:[%s3 + $0x40] sm:$0xff] %v873
  %892 = vst [vmem:[%s3 + $0x48] sm:$0xff] %v874
  %893 = vst [vmem:[%s3 + $0x50] sm:$0xff] %v875
  %894 = vst [vmem:[%s3 + $0x58] sm:$0xff] %v876
  %895 = vst [vmem:[%s3 + $0x60] sm:$0xff] %v877
  %896 = vst [vmem:[%s3 + $0x68] sm:$0xff] %v878
  %897 = vst [vmem:[%s3 + $0x70] sm:$0xff] %v879
  %898 = vst [vmem:[%s3 + $0x78] sm:$0xff] %v880
  %899 = vst [vmem:[%s3 + $0x80] sm:$0xff] %v881
  %900 = vst [vmem:[%s3 + $0x88] sm:$0xff] %v882
  // Predicated region
  $region14: #{downsampling_forward.1} parent=0 // pred_check
    _
  $region15: #{downsampling_forward.1} parent=0 // pred_check_branch
    %902 = sbr.rel (0) target = $region17
  $region16: #{downsampling_forward.1} parent=0 // pred_region
    _
  $region17: #{downsampling_forward.1} parent=0 // pred_fallthru
    _
  // Predicated region
  $region18: #{downsampling_forward.1} parent=0 // pred_check
    _
  $region19: #{downsampling_forward.1} parent=0 // pred_check_branch
    %904 = sbr.rel (0) target = $region21
  $region20: #{downsampling_forward.1} parent=0 // pred_region
    _
  $region21: #{downsampling_forward.1} parent=0 // pred_fallthru
    _

</llo_original>
